<compile_context>
chip_gen: v7x
topology: tpu7x:2x2x1
jax: 0.10.0
libtpu: 0.0.40
codegen_flags: <defaults>
</compile_context>

<pallas_src>
import jax
import jax.numpy as jnp
from jax.experimental import pallas as pl
from jax.experimental.pallas import tpu as pltpu


def _centerloss_kernel(label_ref, feature_ref, center_ref, out_ref):
    # label_ref: (B,) int32 in SMEM (scalar prefetch) -- only used by index_maps.
    del label_ref

    # Zero this split's accumulator at the first inner step.
    @pl.when(pl.program_id(1) == 0)
    def _init():
        out_ref[...] = jnp.zeros_like(out_ref)

    # feature_ref / center_ref: (1, 1, D) f32 -- one sample row and its
    # DMA-gathered center row.
    diff = feature_ref[...] - center_ref[...]
    out_ref[...] += jnp.sum(diff * diff, axis=-1, keepdims=True)  # (1, 1, 1)


def centerloss_forward(feature, label, center, *, n_split=None):
    """feature: (B, D) f32, label: (B,) int, center: (C, D) f32 -> scalar f32."""
    B, D = feature.shape
    C, _ = center.shape

    label_i32 = label.astype(jnp.int32).reshape(B)

    # Two batch splits so v7x's 2 TensorCores both get work; fall back to 1
    # if the batch does not divide evenly.
    if n_split is None:
        n_split = 2 if (B >= 2 and B % 2 == 0) else 1
    rows_per_split = B // n_split

    # (rows, 1, D) layout: trailing block dims == full array dims.
    feat3 = feature.reshape(B, 1, D)
    cent3 = center.reshape(C, 1, D)

    def feat_map(c, j, lbl_ref):
        return (c * rows_per_split + j, 0, 0)

    def cent_map(c, j, lbl_ref):
        # Row gather straight from the SMEM label table (block size 1 along
        # dim 0 => block index == row index).
        return (lbl_ref[c * rows_per_split + j], 0, 0)

    def out_map(c, j, lbl_ref):
        return (c, 0, 0)

    grid_spec = pltpu.PrefetchScalarGridSpec(
        num_scalar_prefetch=1,
        grid=(n_split, rows_per_split),
        in_specs=[
            pl.BlockSpec((1, 1, D), feat_map),   # feature row
            pl.BlockSpec((1, 1, D), cent_map),   # gathered center row
        ],
        out_specs=pl.BlockSpec((1, 1, 1), out_map),
    )

    cost = pl.CostEstimate(
        flops=3 * B * D,                                   # sub, mul, add per elem
        transcendentals=0,
        bytes_accessed=2 * B * D * 4 + B * 4 + n_split * 4,
    )

    partial_sq = pl.pallas_call(
        _centerloss_kernel,
        out_shape=jax.ShapeDtypeStruct((n_split, 1, 1), jnp.float32),
        grid_spec=grid_spec,
        compiler_params=pltpu.CompilerParams(
            dimension_semantics=("parallel", "arbitrary"),
            vmem_limit_bytes=8 * 1024 * 1024,
        ),
        cost_estimate=cost,
    )(label_i32, feat3, cent3)

    # Final reduction / sqrt / scale on the tiny (n_split,) partials in the
    # wrapper; scale uses the GLOBAL batch size.
    sq_sum = jnp.sum(partial_sq)
    return jnp.sqrt(sq_sum) * (1.0 / (2.0 * B))


def centerloss_reference(feature, label, center):
    n_center = center[label]
    return jnp.sqrt(jnp.sum((feature - n_center) ** 2)) / (2.0 * feature.shape[0])


if __name__ == "__main__":
    key = jax.random.PRNGKey(0)
    k_feat, k_center, k_label = jax.random.split(key, 3)

    num_classes, feat_dim, batch = 10, 2, 8

    # Deterministic init matching nn.Parameter(10 * torch.randn(10, 2)).
    center = 10.0 * jax.random.normal(k_center, (num_classes, feat_dim), jnp.float32)
    feature = jax.random.normal(k_feat, (batch, feat_dim), jnp.float32)
    label = jax.random.randint(k_label, (batch,), 0, num_classes, jnp.int32)

    loss = centerloss_forward(feature, label, center)
    loss = jax.block_until_ready(loss)

    ref = centerloss_reference(feature, label, center)
    assert jnp.allclose(loss, ref, rtol=1e-5, atol=1e-6), (loss, ref)

    print("KERNEL_OK")
</pallas_src>

<mosaic_0001>
module attributes {stable_mosaic.version = 11 : i64} {
  func.func @_centerloss_kernel(%arg0: i32, %arg1: i32, %arg2: memref<8xi32, #tpu.memory_space<smem>>, %arg3: memref<1x1x2xf32, #tpu.memory_space<vmem>>, %arg4: memref<1x1x2xf32, #tpu.memory_space<vmem>>, %arg5: memref<1x1x1xf32, #tpu.memory_space<vmem>>) attributes {dimension_semantics = [#tpu.dimension_semantics<parallel>, #tpu.dimension_semantics<arbitrary>], iteration_bounds = array<i64: 2, 4>, scalar_prefetch = 1 : i64, scratch_operands = 0 : i64, tpu.core_type = #tpu.core_type<tc>, window_params = [{transform_indices = @transform_0, window_bounds = array<i64: 1, 1, 2>}, {transform_indices = @transform_1, window_bounds = array<i64: 1, 1, 2>}, {transform_indices = @transform_2, window_bounds = array<i64: 1, 1, 1>}]} {
    %c0_i32 = arith.constant 0 : i32
    %0 = arith.cmpi eq, %arg1, %c0_i32 : i32
    %1 = arith.extui %0 : i1 to i32
    %c0_i32_0 = arith.constant 0 : i32
    %2 = arith.cmpi ne, %1, %c0_i32_0 : i32
    scf.if %2 {
      %cst_12 = arith.constant 0.000000e+00 : f32
      %12 = vector.broadcast %cst_12 : f32 to vector<1x1x1xf32>
      %c0_13 = arith.constant 0 : index
      %c0_14 = arith.constant 0 : index
      %c0_15 = arith.constant 0 : index
      %13 = vector.load %arg5[%c0_13, %c0_14, %c0_15] : memref<1x1x1xf32, #tpu.memory_space<vmem>>, vector<1x1x1xf32>
      tpu.vector_store %arg5[%c0_13, %c0_14, %c0_15], %12 {strides = array<i32>} : memref<1x1x1xf32, #tpu.memory_space<vmem>>, vector<1x1x1xf32>,
    } else {
    }
    %c0 = arith.constant 0 : index
    %c0_1 = arith.constant 0 : index
    %c0_2 = arith.constant 0 : index
    %3 = vector.load %arg3[%c0, %c0_1, %c0_2] : memref<1x1x2xf32, #tpu.memory_space<vmem>>, vector<1x1x2xf32>
    %c0_3 = arith.constant 0 : index
    %c0_4 = arith.constant 0 : index
    %c0_5 = arith.constant 0 : index
    %4 = vector.load %arg4[%c0_3, %c0_4, %c0_5] : memref<1x1x2xf32, #tpu.memory_space<vmem>>, vector<1x1x2xf32>
    %5 = arith.subf %3, %4 : vector<1x1x2xf32>
    %c0_6 = arith.constant 0 : index
    %c0_7 = arith.constant 0 : index
    %c0_8 = arith.constant 0 : index
    %6 = vector.load %arg5[%c0_6, %c0_7, %c0_8] : memref<1x1x1xf32, #tpu.memory_space<vmem>>, vector<1x1x1xf32>
    %7 = arith.mulf %5, %5 : vector<1x1x2xf32>
    %cst = arith.constant dense<0.000000e+00> : vector<1x1xf32>
    %8 = vector.multi_reduction <add>, %7, %cst [2] : vector<1x1x2xf32> to vector<1x1xf32>
    %9 = vector.shape_cast %8 : vector<1x1xf32> to vector<1x1x1xf32>
    %10 = arith.addf %6, %9 : vector<1x1x1xf32>
    %c0_9 = arith.constant 0 : index
    %c0_10 = arith.constant 0 : index
    %c0_11 = arith.constant 0 : index
    %11 = vector.load %arg5[%c0_9, %c0_10, %c0_11] : memref<1x1x1xf32, #tpu.memory_space<vmem>>, vector<1x1x1xf32>
    tpu.vector_store %arg5[%c0_9, %c0_10, %c0_11], %10 {strides = array<i32>} : memref<1x1x1xf32, #tpu.memory_space<vmem>>, vector<1x1x1xf32>,
    return
  }
  func.func @transform_0(%arg0: i32, %arg1: i32, %arg2: memref<8xi32, #tpu.memory_space<smem>>) -> (i32, i32, i32) {
    %c4_i32 = arith.constant 4 : i32
    %0 = arith.muli %arg0, %c4_i32 : i32
    %1 = arith.addi %0, %arg1 : i32
    %c0_i32 = arith.constant 0 : i32
    %c0_i32_0 = arith.constant 0 : i32
    %c0_i32_1 = arith.constant 0 : i32
    return %1, %c0_i32, %c0_i32_0 : i32, i32, i32
  }
  func.func @transform_1(%arg0: i32, %arg1: i32, %arg2: memref<8xi32, #tpu.memory_space<smem>>) -> (i32, i32, i32) {
    %c4_i32 = arith.constant 4 : i32
    %0 = arith.muli %arg0, %c4_i32 : i32
    %1 = arith.addi %0, %arg1 : i32
    %2 = arith.index_cast %1 : i32 to index
    %3 = memref.load %arg2[%2] : memref<8xi32, #tpu.memory_space<smem>>
    %c0_i32 = arith.constant 0 : i32
    %c0_i32_0 = arith.constant 0 : i32
    %c0_i32_1 = arith.constant 0 : i32
    return %3, %c0_i32, %c0_i32_0 : i32, i32, i32
  }
  func.func @transform_2(%arg0: i32, %arg1: i32, %arg2: memref<8xi32, #tpu.memory_space<smem>>) -> (i32, i32, i32) {
    %c0_i32 = arith.constant 0 : i32
    %c0_i32_0 = arith.constant 0 : i32
    %c0_i32_1 = arith.constant 0 : i32
    return %arg0, %c0_i32, %c0_i32_0 : i32, i32, i32
  }
}

</mosaic_0001>

<llo_original>
// kernel: tpu_custom_call.1
$region0: #{tpu_custom_call.1}
  #allocation0 [shape = 'u32[]', space=smem, size = 0x4, offset = 0x4, fixed_abs, tag = 'smem constant byte address 0x4 - core index']
  #allocation1 [shape = 'u32[144,128]{1,0:T(1,128)}', space=vmem, size = 0x12000, scoped, tag = 'internal scratch']
  #allocation2 [shape = 's32[1]{0}', space=sflag, size = 0x4, scoped, tag = 'scoped memory for tpu_custom_call.1']
  #allocation3 [shape = 'u8[512]{0}', space=smem, size = 0x200, scoped, tag = 'prefetched SMEM operand 0']
  %s0 = inlined_call_operand.vmem [shape: s32[8], index: 0, kind: input, shape index: {}]
  %s1 = inlined_call_operand.vmem [shape: f32[8,1,2], index: 1, kind: input, shape index: {}]
  %s2 = inlined_call_operand.vmem [shape: f32[10,1,2], index: 2, kind: input, shape index: {}]
  %s3 = inlined_call_operand.vmem [shape: f32[2,1,1], index: 3, kind: output, shape index: {}]
  %s4 = sld [smem:[#allocation0]]
  $region45: #{tpu_custom_call.1} parent=0
    _
  %s6 = ssub.s32 1, %s4
  %s7 = scalar_select 0, %s6, %s4
  %s8 = sshll.u32 %s0, 4
  %s9 = int_to_ptr.vmem [resolvable:$true] %s8
  %11 = dma.vmem_to_smem %s9, 16, [#allocation3], [#allocation2]
  %12 = dma.done [#allocation2], 16
  %13 = sfence
  loop: start=0, step=1, limit=10
  $region2: #{tpu_custom_call.1} parent=0 // loop_pre_header
    _
  $region3: #{tpu_custom_call.1} parent=0 // loop_header
    %s15 = sphi 0, %s19
    %p16 = scmp.ge.s32.totalorder %s15, 10
    %s22 = sphi 0, %s34
    %s23 = sphi 0, %s30
    %s24 = sphi 0, %s22
    %s25 = sphi 0, %s23
    %s26 = sphi 0, %s24
    %s27 = sphi 0, %s25
    %s41 = sphi 0, %s43
    %s44 = sphi 0, %s41
    %s45 = sphi 0, %s44
    %s61 = sphi 0, %s45
    %s73 = sphi 0, %s75
    %s76 = sphi 0, %s73
    %s77 = sphi 0, %s76
    %s93 = sphi 0, %s77
    %s99 = sphi 0, %s101
    %s102 = sphi 0, %s99
    %s103 = sphi 0, %s102
    %s119 = sphi 0, %s103
  $region4: #{tpu_custom_call.1} parent=0 // loop_header_branch
    %18 = sbr.rel (%p16) target = $region8
  $region5: #{tpu_custom_call.1} parent=0 // loop_body
    %s20 = ssub.s32 %s15, 1
    %s21 = ssub.s32 %s15, 2
    %s28 = sadd.s32 1, %s23
    %p29 = scmp.ge.s32.totalorder %s28, 4
    %s30 = scalar_select %p29, 0, %s28
    %s31 = sadd.s32 1, %s22
    %s32 = scalar_select %p29, %s31, %s22
    %p33 = scmp.ge.s32.totalorder %s32, 2
    %s34 = scalar_select %p33, 0, %s32
    %s35 = smul.u32 %s22, 4
    %s36 = sadd.s32 %s35, %s23
    %s37 = smul.u32 %s34, 4
    %s38 = sadd.s32 %s37, %s30
    %s39 = ssub.s32 %s36, %s38
    %p40 = scmp.eq.s32.totalorder %s39, 0
    %s42 = sadd.s32 %s41, 1
    %s43 = scalar_select %p40, %s41, %s42
    %p46 = pneg %p40
    %p47 = scmp.eq.s32.totalorder %s15, 7
    %p48 = por %p46, %p47
    %p49 = scmp.ne.s32.totalorder %s41, %s44
    %p50 = scmp.eq.s32.totalorder %s15, 0
    %p51 = por %p49, %p50
    %p52 = scmp.ne.s32.totalorder %s41, %s44
    %p53 = scmp.eq.s32.totalorder %s20, 7
    %p54 = por %p52, %p53
    %p55 = scmp.ne.s32.totalorder %s44, %s45
    %p56 = scmp.eq.s32.totalorder %s20, 0
    %p57 = por %p55, %p56
    %p58 = scmp.ne.s32.totalorder %s44, %s45
    %p59 = scmp.eq.s32.totalorder %s21, 7
    %p60 = por %p58, %p59
    %p62 = scmp.ne.s32.totalorder %s45, %s61
    %p63 = scmp.eq.s32.totalorder %s21, 0
    %p64 = por %p62, %p63
    %s65 = smul.u32 %s22, 4
    %s66 = sadd.s32 %s65, %s23
    %s67 = sld [smem:[#allocation3 + %s66]]
    %s68 = smul.u32 %s34, 4
    %s69 = sadd.s32 %s68, %s30
    %s70 = sld [smem:[#allocation3 + %s69]]
    %s71 = ssub.s32 %s67, %s70
    %p72 = scmp.eq.s32.totalorder %s71, 0
    %s74 = sadd.s32 %s73, 1
    %s75 = scalar_select %p72, %s73, %s74
    %p78 = pneg %p72
    %p79 = scmp.eq.s32.totalorder %s15, 7
    %p80 = por %p78, %p79
    %p81 = scmp.ne.s32.totalorder %s73, %s76
    %p82 = scmp.eq.s32.totalorder %s15, 0
    %p83 = por %p81, %p82
    %p84 = scmp.ne.s32.totalorder %s73, %s76
    %p85 = scmp.eq.s32.totalorder %s20, 7
    %p86 = por %p84, %p85
    %p87 = scmp.ne.s32.totalorder %s76, %s77
    %p88 = scmp.eq.s32.totalorder %s20, 0
    %p89 = por %p87, %p88
    %p90 = scmp.ne.s32.totalorder %s76, %s77
    %p91 = scmp.eq.s32.totalorder %s21, 7
    %p92 = por %p90, %p91
    %p94 = scmp.ne.s32.totalorder %s77, %s93
    %p95 = scmp.eq.s32.totalorder %s21, 0
    %p96 = por %p94, %p95
    %s97 = ssub.s32 %s22, %s34
    %p98 = scmp.eq.s32.totalorder %s97, 0
    %s100 = sadd.s32 %s99, 1
    %s101 = scalar_select %p98, %s99, %s100
    %p104 = pneg %p98
    %p105 = scmp.eq.s32.totalorder %s15, 7
    %p106 = por %p104, %p105
    %p107 = scmp.ne.s32.totalorder %s99, %s102
    %p108 = scmp.eq.s32.totalorder %s15, 0
    %p109 = por %p107, %p108
    %p110 = scmp.ne.s32.totalorder %s99, %s102
    %p111 = scmp.eq.s32.totalorder %s20, 7
    %p112 = por %p110, %p111
    %p113 = scmp.ne.s32.totalorder %s102, %s103
    %p114 = scmp.eq.s32.totalorder %s20, 0
    %p115 = por %p113, %p114
    %p116 = scmp.ne.s32.totalorder %s102, %s103
    %p117 = scmp.eq.s32.totalorder %s21, 7
    %p118 = por %p116, %p117
    %p120 = scmp.ne.s32.totalorder %s103, %s119
    %p121 = scmp.eq.s32.totalorder %s21, 0
    %p122 = por %p120, %p121
    %p123 = scmp.le.s32.totalorder 1, %s15
    %p124 = scmp.lt.s32.totalorder %s15, 9
    %p125 = pnand %p123, %p124
    %p126 = pneg %p125
    // Predicated region
    $region9: #{tpu_custom_call.1} parent=5 // pred_check
      _
    $region10: #{tpu_custom_call.1} parent=5 // pred_check_branch
      %128 = sbr.rel (%p125) target = $region12
    $region11: #{tpu_custom_call.1} parent=5 // pred_region
      %s129 = ssub.s32 %s15, 1
    $region12: #{tpu_custom_call.1} parent=5 // pred_fallthru
      _
    %p130 = scmp.lt.s32.totalorder %s15, 8
    // Predicated region
    $region13: #{tpu_custom_call.1} parent=5 // pred_check
      %p131 = pneg %p130
    $region14: #{tpu_custom_call.1} parent=5 // pred_check_branch
      %133 = sbr.rel (%p131) target = $region16
    $region15: #{tpu_custom_call.1} parent=5 // pred_region
      // Predicated region
      $region17: #{tpu_custom_call.1} parent=15 // pred_check
        %p134 = pneg %p51
      $region18: #{tpu_custom_call.1} parent=15 // pred_check_branch
        %136 = sbr.rel (%p134) target = $region20
      $region19: #{tpu_custom_call.1} parent=15 // pred_region
        %s137 = smul.u32 %s22, 4
        %s138 = sadd.s32 %s137, %s23
        %p139 = scmp.lt.s32.totalorder %s138, 7
        %s140 = scalar_select %p139, %s138, 7
        %s141 = scalar_lea.vmem %s1, %s140
        %s142 = smul.u32 %s22, 4
        %s143 = sadd.s32 %s142, %s23
      $region20: #{tpu_custom_call.1} parent=15 // pred_fallthru
        _
      // Predicated region
      $region21: #{tpu_custom_call.1} parent=15 // pred_check
        %p144 = pneg %p83
      $region22: #{tpu_custom_call.1} parent=15 // pred_check_branch
        %146 = sbr.rel (%p144) target = $region24
      $region23: #{tpu_custom_call.1} parent=15 // pred_region
        %s147 = smul.u32 %s22, 4
        %s148 = sadd.s32 %s147, %s23
        %s149 = sld [smem:[#allocation3 + %s148]]
        %p150 = scmp.lt.s32.totalorder %s149, 9
        %s151 = scalar_select %p150, %s149, 9
        %s152 = scalar_lea.vmem %s2, %s151
        %s153 = smul.u32 %s22, 4
        %s154 = sadd.s32 %s153, %s23
        %s155 = sld [smem:[#allocation3 + %s154]]
      $region24: #{tpu_custom_call.1} parent=15 // pred_fallthru
        _
    $region16: #{tpu_custom_call.1} parent=5 // pred_fallthru
      _
    %p156 = scmp.le.s32.totalorder 1, %s15
    %p157 = scmp.lt.s32.totalorder %s15, 9
    %p158 = pnand %p156, %p157
    %p159 = pneg %p158
    // Predicated region
    $region25: #{tpu_custom_call.1} parent=5 // pred_check
      _
    $region26: #{tpu_custom_call.1} parent=5 // pred_check_branch
      %161 = sbr.rel (%p158) target = $region28
    $region27: #{tpu_custom_call.1} parent=5 // pred_region
      %s162 = ssub.s32 %s15, 1
      %s163 = smul.u32 %s24, 4
      %s164 = sadd.s32 %s163, %s25
      %p165 = scmp.lt.s32.totalorder %s164, 7
      %s166 = scalar_select %p165, %s164, 7
      %s167 = scalar_lea.vmem %s1, %s166
      %p168 = pneg %p57
      %p169 = pneg %p54
      %s170 = smul.u32 %s24, 4
      %s171 = sadd.s32 %s170, %s25
      %s172 = sld [smem:[#allocation3 + %s171]]
      %p173 = scmp.lt.s32.totalorder %s172, 9
      %s174 = scalar_select %p173, %s172, 9
      %s175 = scalar_lea.vmem %s2, %s174
      %p176 = pneg %p89
      %p177 = pneg %p86
      %p178 = pneg %p115
      %p179 = pneg %p112
      %p180 = scmp.lt.s32.totalorder %s24, 1
      %s181 = scalar_select %p180, %s24, 1
      %s182 = scalar_lea.vmem %s3, %s181
      %s183 = smul.u32 %s24, 4
      %s184 = sadd.s32 %s183, %s25
      %p185 = scmp.lt.s32.totalorder %s184, 7
      %s186 = scalar_select %p185, %s184, 7
      %s187 = scalar_lea.vmem %s1, %s186
      %s188 = smul.u32 %s24, 4
      %s189 = sadd.s32 %s188, %s25
      %s190 = smul.u32 %s24, 4
      %s191 = sadd.s32 %s190, %s25
      %s192 = sld [smem:[#allocation3 + %s191]]
      %p193 = scmp.lt.s32.totalorder %s192, 9
      %s194 = scalar_select %p193, %s192, 9
      %s195 = scalar_lea.vmem %s2, %s194
      %s196 = smul.u32 %s24, 4
      %s197 = sadd.s32 %s196, %s25
      %s198 = sld [smem:[#allocation3 + %s197]]
      %p199 = scmp.lt.s32.totalorder %s24, 1
      %s200 = scalar_select %p199, %s24, 1
      %s201 = scalar_lea.vmem %s3, %s200
      %p202 = scmp.eq.s32.totalorder %s25, 0
      // Predicated region
      $region29: #{tpu_custom_call.1} parent=27 // pred_check
        %p203 = pneg %p202
      $region30: #{tpu_custom_call.1} parent=27 // pred_check_branch
        %205 = sbr.rel (%p203) target = $region32
      $region31: #{tpu_custom_call.1} parent=27 // pred_region
        %vm206 = vcmask 0
        %207 = vst.msk [vmem:[%s201] sm:$0x1] %vm206, 0.0
      $region32: #{tpu_custom_call.1} parent=27 // pred_fallthru
        _
      %v208 = vld [vmem:[%s187] sm:$0x1]
      %v209 = vld [vmem:[%s195] sm:$0x1]
      %v210 = vsub.f32 %v208, %v209
      %v211 = vld [vmem:[%s201] sm:$0x1]
      %v212 = vmul.f32 %v210, %v210
      %vm213 = vcmask 8192
      %v214 = vsel %vm213, %v212, 0.0
      %215 = vadd.xlane.f32.xlu0 %v214
      %v216 = vpop.xlane.xlu0 %215
      %v217 = vadd.f32 %v211, %v216
      %vm218 = vcmask 0
      %219 = vst.msk [vmem:[%s201] sm:$0x1] %vm218, %v217
      %p220 = scmp.lt.s32.totalorder %s24, 1
      %s221 = scalar_select %p220, %s24, 1
      %s222 = scalar_lea.vmem %s3, %s221
      // Predicated region
      $region33: #{tpu_custom_call.1} parent=27 // pred_check
        %p223 = pneg %p112
      $region34: #{tpu_custom_call.1} parent=27 // pred_check_branch
        %225 = sbr.rel (%p223) target = $region36
      $region35: #{tpu_custom_call.1} parent=27 // pred_region
        _
      $region36: #{tpu_custom_call.1} parent=27 // pred_fallthru
        _
    $region28: #{tpu_custom_call.1} parent=5 // pred_fallthru
      _
    %p226 = scmp.le.s32.totalorder 2, %s15
    // Predicated region
    $region37: #{tpu_custom_call.1} parent=5 // pred_check
      %p227 = pneg %p226
    $region38: #{tpu_custom_call.1} parent=5 // pred_check_branch
      %229 = sbr.rel (%p227) target = $region40
    $region39: #{tpu_custom_call.1} parent=5 // pred_region
      %s230 = ssub.s32 %s15, 2
      // Predicated region
      $region41: #{tpu_custom_call.1} parent=39 // pred_check
        %p231 = pneg %p118
      $region42: #{tpu_custom_call.1} parent=39 // pred_check_branch
        %233 = sbr.rel (%p231) target = $region44
      $region43: #{tpu_custom_call.1} parent=39 // pred_region
        %p234 = scmp.lt.s32.totalorder %s26, 1
        %s235 = scalar_select %p234, %s26, 1
        %s236 = scalar_lea.vmem %s3, %s235
      $region44: #{tpu_custom_call.1} parent=39 // pred_fallthru
        _
    $region40: #{tpu_custom_call.1} parent=5 // pred_fallthru
      _
  $region6: #{tpu_custom_call.1} parent=0 // loop_footer
    %s19 = sadd.s32 1, %s15
  $region7: #{tpu_custom_call.1} parent=0 // loop_footer_branch
    %14 = sbr.rel target = $region3
  $region8: #{tpu_custom_call.1} parent=0 // loop_exit
    _

</llo_original>
